<compile_context>
chip_gen: v6e
topology: v6e:2x2x1
jax: 0.10.0
libtpu: 0.0.40
codegen_flags: <defaults>
</compile_context>

<pallas_src>
import functools

import jax
import jax.numpy as jnp
from jax.experimental import pallas as pl
from jax.experimental.pallas import tpu as pltpu


# ----------------------------- kernels -------------------------------------


def _copy_kernel(x_ref, o_ref):
    # forward: identity (equivalent to x.clone())
    o_ref[...] = x_ref[...]


def _scale_kernel(x_ref, o_ref, *, scale):
    # backward: multiply incoming cotangent by -lambda
    o_ref[...] = x_ref[...] * jnp.asarray(scale, dtype=o_ref.dtype)


# ------------------------- tiled elementwise launcher -----------------------


def _row_tile(m, n, itemsize, target_bytes=2 << 20):
    """Pick a row tile: multiple of 8 (or full M), ~target_bytes per tile."""
    rows = max(8, target_bytes // max(1, n * itemsize))
    rows = (rows // 8) * 8
    if rows >= m:
        return m          # full dim -> always a legal block shape
    return rows           # multiple of 8, last dim stays full (lane-dense)


def _elementwise_pallas(kernel_fn, x, *, flops_per_elem=0):
    """Run an elementwise kernel over x, tiled along rows with a parallel grid."""
    orig_shape = x.shape
    if x.ndim < 2:
        x2 = x.reshape(1, max(1, x.size))
    else:
        x2 = x.reshape(-1, x.shape[-1])

    m, n = x2.shape
    itemsize = x2.dtype.itemsize
    tm = _row_tile(m, n, itemsize)
    tile_bytes = tm * n * itemsize

    out2 = pl.pallas_call(
        kernel_fn,
        out_shape=jax.ShapeDtypeStruct((m, n), x2.dtype),
        grid=(pl.cdiv(m, tm),),
        in_specs=[pl.BlockSpec((tm, n), lambda i: (i, 0))],
        out_specs=pl.BlockSpec((tm, n), lambda i: (i, 0)),
        compiler_params=pltpu.CompilerParams(
            dimension_semantics=("parallel",),
            # double-buffered input + output tiles, with headroom
            vmem_limit_bytes=int(max(4 << 20, 8 * tile_bytes)),
        ),
        cost_estimate=pl.CostEstimate(
            flops=int(flops_per_elem * x2.size),
            transcendentals=0,
            bytes_accessed=int(2 * x2.size * itemsize),
        ),
    )(x2)
    return out2.reshape(orig_shape)


# ----------------------- gradient reversal (custom_vjp) ---------------------


@functools.partial(jax.custom_vjp, nondiff_argnums=(1,))
def gradient_reversal(x, lambda_=1.0):
    """Forward: identity copy. Backward: grad -> -lambda_ * grad."""
    return _elementwise_pallas(_copy_kernel, x)


def _grl_fwd(x, lambda_):
    return _elementwise_pallas(_copy_kernel, x), None


def _grl_bwd(lambda_, _residual, g):
    scale_kernel = functools.partial(_scale_kernel, scale=-float(lambda_))
    return (_elementwise_pallas(scale_kernel, g, flops_per_elem=1),)


gradient_reversal.defvjp(_grl_fwd, _grl_bwd)


class GradientReversalLayer:
    """JAX/Pallas counterpart of the PyTorch GradientReversalLayer module."""

    def __init__(self, lambda_=1.0):
        self.lambda_ = float(lambda_)

    def __call__(self, x):
        return gradient_reversal(x, self.lambda_)


# ----------------------------------- test -----------------------------------


if __name__ == "__main__":
    key = jax.random.PRNGKey(0)
    x = jax.random.normal(key, (2, 4, 16, 16), jnp.float32)
    lambda_ = 1.0

    layer = GradientReversalLayer(lambda_)
    y = jax.block_until_ready(layer(x))
    assert y.shape == x.shape, (y.shape, x.shape)
    assert jnp.allclose(y, x), "forward must be identity"

    # Gradient check: d/dx sum(GRL(x)) == -lambda * ones
    g = jax.block_until_ready(
        jax.grad(lambda t: jnp.sum(gradient_reversal(t, lambda_)))(x))
    assert jnp.allclose(g, -lambda_ * jnp.ones_like(x)), \
        "backward must multiply the gradient by -lambda"

    # Larger 2-D case to exercise the row-tiled, pipelined grid path.
    xb = jax.random.normal(jax.random.PRNGKey(1), (4096, 512), jnp.float32)
    yb = jax.block_until_ready(gradient_reversal(xb, 0.5))
    assert jnp.allclose(yb, xb)

    print("KERNEL_OK")
</pallas_src>

<mosaic_0001>
module attributes {stable_mosaic.version = 11 : i64} {
  func.func @_copy_kernel(%arg0: i32, %arg1: memref<128x16xf32, #tpu.memory_space<vmem>>, %arg2: memref<128x16xf32, #tpu.memory_space<vmem>>) attributes {dimension_semantics = [#tpu.dimension_semantics<parallel>], iteration_bounds = array<i64: 1>, scalar_prefetch = 0 : i64, scratch_operands = 0 : i64, tpu.core_type = #tpu.core_type<tc>, window_params = [{transform_indices = @transform_0, window_bounds = array<i64: 128, 16>}, {transform_indices = @transform_1, window_bounds = array<i64: 128, 16>}]} {
    %c0 = arith.constant 0 : index
    %c0_0 = arith.constant 0 : index
    %0 = vector.load %arg1[%c0, %c0_0] : memref<128x16xf32, #tpu.memory_space<vmem>>, vector<128x16xf32>
    %c0_1 = arith.constant 0 : index
    %c0_2 = arith.constant 0 : index
    %1 = vector.load %arg2[%c0_1, %c0_2] : memref<128x16xf32, #tpu.memory_space<vmem>>, vector<128x16xf32>
    tpu.vector_store %arg2[%c0_1, %c0_2], %0 {strides = array<i32>} : memref<128x16xf32, #tpu.memory_space<vmem>>, vector<128x16xf32>,
    return
  }
  func.func @transform_0(%arg0: i32) -> (i32, i32) {
    %c0_i32 = arith.constant 0 : i32
    %c0_i32_0 = arith.constant 0 : i32
    return %arg0, %c0_i32 : i32, i32
  }
  func.func @transform_1(%arg0: i32) -> (i32, i32) {
    %c0_i32 = arith.constant 0 : i32
    %c0_i32_0 = arith.constant 0 : i32
    return %arg0, %c0_i32 : i32, i32
  }
}

</mosaic_0001>

<llo_original>
// kernel: tpu_custom_call.1
$region0: #{tpu_custom_call.1}
  #allocation0 [shape = 'u32[]', space=smem, size = 0x4, offset = 0x4, fixed_abs, tag = 'smem constant byte address 0x4 - core index']
  #allocation1 [shape = 'u32[144,128]{1,0:T(1,128)}', space=vmem, size = 0x12000, scoped, tag = 'internal scratch']
  %s0 = inlined_call_operand.vmem [shape: f32[128,16], index: 0, kind: input, shape index: {}]
  %s1 = inlined_call_operand.vmem [shape: f32[128,16], index: 1, kind: output, shape index: {}]
  %s2 = sld [smem:[#allocation0]]
  $region14: #{tpu_custom_call.1} parent=0
    _
  %s4 = ssub.s32 1, %s2
  %s5 = scalar_select 0, %s4, %s2
  // Predicated region
  $region2: #{tpu_custom_call.1} parent=0 // pred_check
    _
  $region3: #{tpu_custom_call.1} parent=0 // pred_check_branch
    %7 = sbr.rel (0) target = $region5
  $region4: #{tpu_custom_call.1} parent=0 // pred_region
    _
  $region5: #{tpu_custom_call.1} parent=0 // pred_fallthru
    _
  %v8 = vld [vmem:[%s0] sm:$0xff]
  %v9 = vld [vmem:[%s0 + $0x8] sm:$0xff]
  %v10 = vld [vmem:[%s0 + $0x10] sm:$0xff]
  %v11 = vld [vmem:[%s0 + $0x18] sm:$0xff]
  %v12 = vld [vmem:[%s0 + $0x20] sm:$0xff]
  %v13 = vld [vmem:[%s0 + $0x28] sm:$0xff]
  %v14 = vld [vmem:[%s0 + $0x30] sm:$0xff]
  %v15 = vld [vmem:[%s0 + $0x38] sm:$0xff]
  %v16 = vld [vmem:[%s0 + $0x40] sm:$0xff]
  %v17 = vld [vmem:[%s0 + $0x48] sm:$0xff]
  %v18 = vld [vmem:[%s0 + $0x50] sm:$0xff]
  %v19 = vld [vmem:[%s0 + $0x58] sm:$0xff]
  %v20 = vld [vmem:[%s0 + $0x60] sm:$0xff]
  %v21 = vld [vmem:[%s0 + $0x68] sm:$0xff]
  %v22 = vld [vmem:[%s0 + $0x70] sm:$0xff]
  %v23 = vld [vmem:[%s0 + $0x78] sm:$0xff]
  %vm24 = vcmask 130048
  %25 = vst.msk [vmem:[%s1] sm:$0xff] %vm24, %v8
  %26 = vst.msk [vmem:[%s1 + $0x8] sm:$0xff] %vm24, %v9
  %27 = vst.msk [vmem:[%s1 + $0x10] sm:$0xff] %vm24, %v10
  %28 = vst.msk [vmem:[%s1 + $0x18] sm:$0xff] %vm24, %v11
  %29 = vst.msk [vmem:[%s1 + $0x20] sm:$0xff] %vm24, %v12
  %30 = vst.msk [vmem:[%s1 + $0x28] sm:$0xff] %vm24, %v13
  %31 = vst.msk [vmem:[%s1 + $0x30] sm:$0xff] %vm24, %v14
  %32 = vst.msk [vmem:[%s1 + $0x38] sm:$0xff] %vm24, %v15
  %33 = vst.msk [vmem:[%s1 + $0x40] sm:$0xff] %vm24, %v16
  %34 = vst.msk [vmem:[%s1 + $0x48] sm:$0xff] %vm24, %v17
  %35 = vst.msk [vmem:[%s1 + $0x50] sm:$0xff] %vm24, %v18
  %36 = vst.msk [vmem:[%s1 + $0x58] sm:$0xff] %vm24, %v19
  %37 = vst.msk [vmem:[%s1 + $0x60] sm:$0xff] %vm24, %v20
  %38 = vst.msk [vmem:[%s1 + $0x68] sm:$0xff] %vm24, %v21
  %39 = vst.msk [vmem:[%s1 + $0x70] sm:$0xff] %vm24, %v22
  %40 = vst.msk [vmem:[%s1 + $0x78] sm:$0xff] %vm24, %v23
  // Predicated region
  $region6: #{tpu_custom_call.1} parent=0 // pred_check
    _
  $region7: #{tpu_custom_call.1} parent=0 // pred_check_branch
    %42 = sbr.rel (0) target = $region9
  $region8: #{tpu_custom_call.1} parent=0 // pred_region
    _
  $region9: #{tpu_custom_call.1} parent=0 // pred_fallthru
    _
  // Predicated region
  $region10: #{tpu_custom_call.1} parent=0 // pred_check
    _
  $region11: #{tpu_custom_call.1} parent=0 // pred_check_branch
    %44 = sbr.rel (0) target = $region13
  $region12: #{tpu_custom_call.1} parent=0 // pred_region
    _
  $region13: #{tpu_custom_call.1} parent=0 // pred_fallthru
    _

</llo_original>
